<compile_context>
chip_gen: v7x
topology: tpu7x:2x2x1
jax: 0.10.0
libtpu: 0.0.40
codegen_flags: <defaults>
</compile_context>

<pallas_src>
import functools

import jax
import jax.numpy as jnp
import numpy as np
from jax.experimental import pallas as pl
from jax.experimental.pallas import tpu as pltpu


def _round_up(x: int, m: int) -> int:
    return ((x + m - 1) // m) * m


def _sublane(dtype) -> int:
    """Sublane tile height for a dtype: 8 (f32), 16 (bf16), 32 (int8)."""
    return max(8, 32 // jnp.dtype(dtype).itemsize)


def _vmem_budget_bytes() -> int:
    """Scoped-VMEM budget derived from the actual chip, with headroom."""
    try:
        cap = int(pltpu.get_tpu_info().vmem_capacity_bytes)
    except Exception:  # off-TPU trace / older jax: assume the smallest (v7x, 64 MiB)
        cap = 64 * 1024 * 1024
    return min(int(cap * 0.6), 64 * 1024 * 1024)


def _pick_tile(hw: int, padded_c: int, itemsize: int, budget: int) -> int:
    """Largest 128-multiple tile width whose phase-1 working set fits the budget.

    Phase 1 is the VMEM-heaviest: input + output blocks double-buffered plus
    compute temporaries ~ 6 blocks of padded_c * tile * max(itemsize, 4) bytes
    (sublane padding and f32 working copies are both accounted for).
    """
    bytes_per_lane = 6 * padded_c * max(itemsize, 4)
    max_tile = budget // bytes_per_lane
    tile = max(128, (max_tile // 128) * 128)
    return int(min(tile, _round_up(hw, 128)))


# ----------------------------- kernels --------------------------------------


def _fused_small_kernel(x_ref, ch_ref, o_ref, *, n: int, std_noise: float):
    """Single-block fast path: moments + std + per-channel add fused."""
    x = x_ref[...].astype(jnp.float32)                 # (C, hw)
    mean = jnp.sum(x) / n
    dev = x - mean
    m2 = jnp.sum(dev * dev)
    # Unbiased std (torch.Tensor.std()); n == 1 yields NaN, same as torch.
    noise_level = jnp.sqrt(m2 / (n - 1.0)) * std_noise  # sqrt -> EUP slot
    o_ref[...] = (x + ch_ref[...] * noise_level).astype(o_ref.dtype)


def _moments_kernel(x_ref, sum_ref, m2_ref, *, hw: int, tile: int, c: int):
    """Per-tile locally centered partial moments (parallel across tiles / TCs)."""
    t = pl.program_id(0)
    valid = jnp.minimum(hw - t * tile, tile)            # in-bounds columns
    x = x_ref[...].astype(jnp.float32)                  # (C, tile)
    lane = jax.lax.broadcasted_iota(jnp.int32, x.shape, 1)
    mask = lane < valid
    xm = jnp.where(mask, x, 0.0)
    s = jnp.sum(xm)
    cnt = (valid * c).astype(jnp.float32)
    local_mean = s / cnt
    dev = jnp.where(mask, x - local_mean, 0.0)
    m2 = jnp.sum(dev * dev)
    # Lane/sublane-dense (1,8,128) writeback of the two per-tile scalars.
    sum_ref[...] = jnp.full(sum_ref.shape, s, dtype=jnp.float32)
    m2_ref[...] = jnp.full(m2_ref.shape, m2, dtype=jnp.float32)


def _add_noise_kernel(x_ref, noise_ref, o_ref):
    """out = x + per-channel offset (native dtype, broadcast over lanes)."""
    o_ref[...] = x_ref[...] + noise_ref[...]


# ----------------------------- wrapper --------------------------------------


def channel_noise(x, y, key, std_noise=0.1, *, _force_tile=None):
    """Forward pass of ChannelNoise. Returns (x_noisy, y)."""
    C, H, W = x.shape
    hw = H * W
    n = C * hw
    dtype = x.dtype
    itemsize = jnp.dtype(dtype).itemsize
    padded_c = _round_up(C, _sublane(dtype))            # sublane-padded VMEM rows
    budget = _vmem_budget_bytes()

    x2 = x.reshape(C, hw)                                # lane-dense 2D view
    ch_noise = jax.random.uniform(key, (C,), dtype=jnp.float32)  # torch.rand(C)

    fast_bytes = 6 * padded_c * hw * max(itemsize, 4)
    if _force_tile is None and fast_bytes <= budget:
        # ---- Fast path: one fused, fully VMEM-resident kernel (1R + 1W). ----
        out2 = pl.pallas_call(
            functools.partial(_fused_small_kernel, n=n, std_noise=float(std_noise)),
            out_shape=jax.ShapeDtypeStruct((C, hw), dtype),
            compiler_params=pltpu.CompilerParams(vmem_limit_bytes=budget),
        )(x2, ch_noise.reshape(C, 1))
        return out2.reshape(C, H, W), y

    # ---- Streaming path: 2 reads + 1 write of x, tiled over 128-lane tiles. ----
    tile = _pick_tile(hw, padded_c, itemsize, budget) if _force_tile is None \
        else int(_force_tile)
    num_tiles = (hw + tile - 1) // tile

    # Phase 0: per-tile partial moments; "parallel" -> both v7x TCs share it.
    sums, m2s = pl.pallas_call(
        functools.partial(_moments_kernel, hw=hw, tile=tile, c=C),
        out_shape=(
            jax.ShapeDtypeStruct((num_tiles, 8, 128), jnp.float32),
            jax.ShapeDtypeStruct((num_tiles, 8, 128), jnp.float32),
        ),
        grid=(num_tiles,),
        in_specs=[pl.BlockSpec((C, tile), lambda t: (0, t))],
        out_specs=(
            pl.BlockSpec((1, 8, 128), lambda t: (t, 0, 0)),
            pl.BlockSpec((1, 8, 128), lambda t: (t, 0, 0)),
        ),
        compiler_params=pltpu.CompilerParams(
            dimension_semantics=("parallel",),
            vmem_limit_bytes=budget,
        ),
    )(x2)

    # Group-statistics combine (tiny, O(num_tiles)).  Every squared term is a
    # deviation, never sumsq - n*mean^2, so no catastrophic cancellation.
    s_t = sums[:, 0, 0]
    m2_t = m2s[:, 0, 0]
    starts = np.arange(num_tiles) * tile
    cnt_t = jnp.asarray(np.minimum(hw - starts, tile) * C, dtype=jnp.float32)
    mean = jnp.sum(s_t) / n
    m2 = jnp.sum(m2_t) + jnp.sum(cnt_t * (s_t / cnt_t - mean) ** 2)
    # Unbiased std (matches torch.Tensor.std()); n == 1 -> NaN, same as torch.
    noise_level = jnp.sqrt(m2 / (n - 1.0)) * std_noise
    scaled_noise = (ch_noise * noise_level).astype(dtype).reshape(C, 1)

    # Phase 1: out = x + per-channel offset; native-dtype add, parallel tiles.
    out2 = pl.pallas_call(
        _add_noise_kernel,
        out_shape=jax.ShapeDtypeStruct((C, hw), dtype),
        grid=(num_tiles,),
        in_specs=[
            pl.BlockSpec((C, tile), lambda t: (0, t)),
            pl.BlockSpec((C, 1), lambda t: (0, 0)),   # resident, DMA'd once
        ],
        out_specs=pl.BlockSpec((C, tile), lambda t: (0, t)),
        compiler_params=pltpu.CompilerParams(
            dimension_semantics=("parallel",),
            vmem_limit_bytes=budget,
        ),
    )(x2, scaled_noise)
    return out2.reshape(C, H, W), y


def _reference(x, y, ch_noise, std_noise=0.1):
    noise_level = jnp.std(x, ddof=1) * std_noise
    return x + ch_noise.reshape(-1, 1, 1) * noise_level, y


if __name__ == "__main__":
    key = jax.random.PRNGKey(0)
    kx, ky, kn, kx2, kn2 = jax.random.split(key, 5)

    # --- Small input: exercises the fused single-block fast path. ---
    C, H, W = 4, 16, 16
    x = jax.random.normal(kx, (C, H, W), dtype=jnp.float32)
    y = jax.random.randint(ky, (H, W), 0, C, dtype=jnp.int32)  # seg label pass-through
    out_x, out_y = channel_noise(x, y, kn, std_noise=0.1)
    out_x = jax.block_until_ready(out_x)

    ch = jax.random.uniform(kn, (C,), dtype=jnp.float32)
    ref_x, ref_y = _reference(x, y, ch, std_noise=0.1)
    assert jnp.allclose(out_x, ref_x, atol=1e-5, rtol=1e-5), "fast-path mismatch"
    assert (out_y == ref_y).all(), "label must pass through unchanged"

    # --- Small-but-tiled input: exercises the streaming path (ragged tail,
    #     non-centered data -> checks the robust variance combine). ---
    C2, H2, W2 = 3, 40, 40                     # hw = 1600 = 3*512 + 64
    x2 = jax.random.normal(kx2, (C2, H2, W2), dtype=jnp.float32) * 3.0 + 5.0
    y2 = jax.random.randint(ky, (H2, W2), 0, C2, dtype=jnp.int32)
    out_x2, out_y2 = channel_noise(x2, y2, kn2, std_noise=0.1, _force_tile=512)
    out_x2 = jax.block_until_ready(out_x2)

    ch2 = jax.random.uniform(kn2, (C2,), dtype=jnp.float32)
    ref_x2, _ = _reference(x2, y2, ch2, std_noise=0.1)
    assert jnp.allclose(out_x2, ref_x2, atol=1e-4, rtol=1e-5), "tiled-path mismatch"
    assert (out_y2 == y2).all(), "label must pass through unchanged"

    print("KERNEL_OK")
</pallas_src>

<mosaic_0001>
module attributes {stable_mosaic.version = 11 : i64} {
  func.func @_fused_small_kernel(%arg0: memref<4x256xf32, #tpu.memory_space<vmem>>, %arg1: memref<4x1xf32, #tpu.memory_space<vmem>>, %arg2: memref<4x256xf32, #tpu.memory_space<vmem>>) attributes {dimension_semantics = [], scalar_prefetch = 0 : i64, scratch_operands = 0 : i64, tpu.core_type = #tpu.core_type<tc>} {
    %c0 = arith.constant 0 : index
    %c0_0 = arith.constant 0 : index
    %0 = vector.load %arg0[%c0, %c0_0] : memref<4x256xf32, #tpu.memory_space<vmem>>, vector<4x256xf32>
    %1 = vector.shape_cast %0 : vector<4x256xf32> to vector<1x4x256xf32>
    %cst = arith.constant dense<0.000000e+00> : vector<1xf32>
    %2 = vector.multi_reduction <add>, %1, %cst [1, 2] : vector<1x4x256xf32> to vector<1xf32>
    %3 = vector.shape_cast %2 : vector<1xf32> to vector<1x1x1xf32>
    %4 = vector.extract %3[0, 0, 0] : f32 from vector<1x1x1xf32>
    %cst_1 = arith.constant 1.024000e+03 : f32
    %5 = arith.divf %4, %cst_1 : f32
    %6 = vector.broadcast %5 : f32 to vector<4x256xf32>
    %7 = arith.subf %0, %6 : vector<4x256xf32>
    %8 = arith.mulf %7, %7 : vector<4x256xf32>
    %9 = vector.shape_cast %8 : vector<4x256xf32> to vector<1x4x256xf32>
    %cst_2 = arith.constant dense<0.000000e+00> : vector<1xf32>
    %10 = vector.multi_reduction <add>, %9, %cst_2 [1, 2] : vector<1x4x256xf32> to vector<1xf32>
    %11 = vector.shape_cast %10 : vector<1xf32> to vector<1x1x1xf32>
    %12 = vector.extract %11[0, 0, 0] : f32 from vector<1x1x1xf32>
    %cst_3 = arith.constant 1.023000e+03 : f32
    %13 = arith.divf %12, %cst_3 : f32
    %14 = math.sqrt %13 : f32
    %cst_4 = arith.constant 1.000000e-01 : f32
    %15 = arith.mulf %14, %cst_4 : f32
    %c0_5 = arith.constant 0 : index
    %c0_6 = arith.constant 0 : index
    %16 = vector.load %arg1[%c0_5, %c0_6] : memref<4x1xf32, #tpu.memory_space<vmem>>, vector<4x1xf32>
    %17 = vector.broadcast %15 : f32 to vector<4x1xf32>
    %18 = arith.mulf %16, %17 : vector<4x1xf32>
    %19 = vector.broadcast %18 : vector<4x1xf32> to vector<4x256xf32>
    %20 = arith.addf %0, %19 : vector<4x256xf32>
    %c0_7 = arith.constant 0 : index
    %c0_8 = arith.constant 0 : index
    %21 = vector.load %arg2[%c0_7, %c0_8] : memref<4x256xf32, #tpu.memory_space<vmem>>, vector<4x256xf32>
    tpu.vector_store %arg2[%c0_7, %c0_8], %20 {strides = array<i32>} : memref<4x256xf32, #tpu.memory_space<vmem>>, vector<4x256xf32>,
    return
  }
}

</mosaic_0001>

<llo_original>
// kernel: tpu_custom_call.1
$region0: #{tpu_custom_call.1}
  #allocation0 [shape = 'u32[]', space=smem, size = 0x4, offset = 0x4, fixed_abs, tag = 'smem constant byte address 0x4 - core index']
  #allocation1 [shape = 'u32[144,128]{1,0:T(1,128)}', space=vmem, size = 0x12000, scoped, tag = 'internal scratch']
  %s0 = inlined_call_operand.hbm [shape: f32[4,256], index: 0, kind: input, shape index: {}]
  %s1 = inlined_call_operand.vmem [shape: f32[4,1], index: 1, kind: input, shape index: {}]
  %s2 = inlined_call_operand.hbm [shape: f32[4,256], index: 2, kind: output, shape index: {}]
  %s3 = sld [smem:[#allocation0]]
  $region22: #{tpu_custom_call.1} parent=0
    _
  %s5 = ssub.s32 1, %s3
  %s6 = scalar_select 0, %s5, %s3
  $region1: #{tpu_custom_call.1} parent=0
    #allocation2 [shape = 'u8[4096]{0}', space=vmem, size = 0x1000, scoped, tag = 'input window, operand 0, single buffered']
    #allocation3 [shape = 's32[1]{0}', space=sflag, size = 0x4, scoped, tag = 'scoped memory for tpu_custom_call.1']
    #allocation4 [shape = 's32[1]{0}', space=sflag, size = 0x4, scoped, tag = 'scoped memory for tpu_custom_call.1']
    #allocation5 [shape = 'u8[4096]{0}', space=vmem, size = 0x1000, scoped, tag = 'output window, operand 0, single buffered']
    %7 = vsyncpa [#allocation3], 0
    %8 = vsyncpa [#allocation4], 0
    // Predicated region
    $region2: #{tpu_custom_call.1} parent=1 // pred_check
      _
    $region3: #{tpu_custom_call.1} parent=1 // pred_check_branch
      %10 = sbr.rel (0) target = $region5
    $region4: #{tpu_custom_call.1} parent=1 // pred_region
      %s12 = ssub.s32 128, 128
      %13 = vsyncadd [#allocation3], %s12
      %s15 = sshll.u32 [#allocation2], 4
      %s16 = int_to_ptr.vmem [resolvable:$true] %s15
      %18 = dma.hbm_to_vmem [thread:$0]  %s0, 128, %s16, [#allocation3]
    $region5: #{tpu_custom_call.1} parent=1 // pred_fallthru
      _
    // Predicated region
    $region6: #{tpu_custom_call.1} parent=1 // pred_check
      _
    $region7: #{tpu_custom_call.1} parent=1 // pred_check_branch
      %20 = sbr.rel (0) target = $region9
    $region8: #{tpu_custom_call.1} parent=1 // pred_region
      _
    $region9: #{tpu_custom_call.1} parent=1 // pred_fallthru
      _
    // Predicated region
    $region10: #{tpu_custom_call.1} parent=1 // pred_check
      _
    $region11: #{tpu_custom_call.1} parent=1 // pred_check_branch
      %22 = sbr.rel (0) target = $region13
    $region12: #{tpu_custom_call.1} parent=1 // pred_region
      %23 = dma.done [#allocation3], 128
    $region13: #{tpu_custom_call.1} parent=1 // pred_fallthru
      _
    %v24 = vld [vmem:[#allocation2] sm:$0xff]
    %v26 = vcombine.high %v24, %v24
    %vm28 = vcmask 1043456
    %v29 = vsel %vm28, %v24, 0.0
    %v30 = vsel %vm28, %v26, 0.0
    %v31 = vadd.f32 %v29, %v30
    %32 = vadd.xlane.f32.xlu0 %v31
    %v33 = vpop.xlane.xlu0 %32
    %v34 = vrot.slane %v33, 4
    %v35 = vadd.f32 %v33, %v34
    %v36 = vrot.slane %v35, 2
    %v37 = vadd.f32 %v35, %v36
    %v38 = vrot.slane %v37, 1
    %v39 = vadd.f32 %v37, %v38
    %s40 = vtos %v39
    %v41 = vrcp.pop 1024.0
    %s42 = vtos %v41
    %s43 = smul.f32 %s40, %s42
    %v44 = vstv %s43
    %v45 = vsub.f32 %v24, %v44
    %v46 = vmul.f32 %v45, %v45
    %v48 = vcombine.high %v46, %v46
    %v50 = vsel %vm28, %v46, 0.0
    %v51 = vsel %vm28, %v48, 0.0
    %v52 = vadd.f32 %v50, %v51
    %53 = vadd.xlane.f32.xlu0 %v52
    %v54 = vpop.xlane.xlu0 %53
    %v55 = vrot.slane %v54, 4
    %v56 = vadd.f32 %v54, %v55
    %v57 = vrot.slane %v56, 2
    %v58 = vadd.f32 %v56, %v57
    %v59 = vrot.slane %v58, 1
    %v60 = vadd.f32 %v58, %v59
    %s61 = vtos %v60
    %v62 = vrcp.pop 1023.0
    %s63 = vtos %v62
    %s64 = smul.f32 %s61, %s63
    %v65 = vstv %s64
    %v66 = vrsqrt.pop %v65
    %v67 = vmul.f32 %v65, %v66
    %vm68 = vcmp.eq.f32.partialorder %v65, inf
    %v69 = vsel %vm68, %v65, %v67
    %vm70 = vcmp.eq.f32.partialorder %v65, 0.0
    %v71 = vand.u32 %v65, 2147483648
    %v72 = vsel %vm70, %v71, %v69
    %s73 = vtos %v72
    %s74 = smul.f32 %s73, 0.1
    %v75 = vld [vmem:[%s1] sm:$0xf]
    %v76 = vstv %s74
    %v77 = vmul.f32 %v75, %v76
    %79 = vset.pattern.permute.xlu0 0
    %80 = vperm.xlu0 %79, %v77
    %v81 = vpop.permute.xlu0 %80
    %v83 = vunpack.c.l.s4 839922192
    %v84 = vunpack.c.0.s8 %v83
    %v85 = vlaneseq
    %v86 = vshrl.u32 %v85, 7
    %v87 = vsub.s32 %v84, %v86
    %v88 = vrot.slane %v81, %v87
    %v90 = vadd.f32 %v24, %v88
    %91 = vst [vmem:[#allocation5] sm:$0xff] %v90
    // Predicated region
    $region14: #{tpu_custom_call.1} parent=1 // pred_check
      _
    $region15: #{tpu_custom_call.1} parent=1 // pred_check_branch
      %93 = sbr.rel (0) target = $region17
    $region16: #{tpu_custom_call.1} parent=1 // pred_region
      %s95 = ssub.s32 128, 128
      %96 = vsyncadd [#allocation4], %s95
      %s98 = sshll.u32 [#allocation5], 4
      %s99 = int_to_ptr.vmem [resolvable:$true] %s98
      %101 = dma.vmem_to_hbm [thread:$0]  %s99, 128, %s2, [#allocation4]
    $region17: #{tpu_custom_call.1} parent=1 // pred_fallthru
      _
    // Predicated region
    $region18: #{tpu_custom_call.1} parent=1 // pred_check
      _
    $region19: #{tpu_custom_call.1} parent=1 // pred_check_branch
      %103 = sbr.rel (0) target = $region21
    $region20: #{tpu_custom_call.1} parent=1 // pred_region
      %104 = dma.done [#allocation4], 128
    $region21: #{tpu_custom_call.1} parent=1 // pred_fallthru
      _
    %105 = vsyncpa [#allocation3], 1
    %106 = vsyncpa [#allocation4], 1

</llo_original>
